<compile_context>
chip_gen: v5e
topology: v5e:2x2
jax: 0.10.0
libtpu: 0.0.40
codegen_flags: <defaults>
</compile_context>

<pallas_src>
import jax
import jax.numpy as jnp
import numpy as np
from jax.experimental import pallas as pl
from jax.experimental.pallas import tpu as pltpu


def _linear_kernel(x_ref, w_ref, b_ref, o_ref):
    # x_ref: (Cin, TM)   w_ref: (Cout, Cin)   b_ref: (Cout, 1)   o_ref: (Cout, TM)
    acc = jnp.dot(w_ref[...], x_ref[...], preferred_element_type=jnp.float32)
    o_ref[...] = (acc + b_ref[...]).astype(o_ref.dtype)


def _pick_m_tile(m, max_tile=2048):
    """Largest lane-dense tile (multiple of 128) dividing m, capped at
    max_tile; at small m just use the full extent (single grid step)."""
    if m <= max_tile:
        return m
    for t in (2048, 1024, 512, 256, 128):
        if m % t == 0:
            return t
    return m


def linear_forward(x, weight, bias):
    """x: (N, Cin, H, W) f32.  weight: (Cout, Cin).  bias: broadcastable to Cout."""
    N, Cin, H, W = x.shape
    Cout = weight.shape[0]
    M = N * H * W

    # Lane-dense slabs: channels on sublanes, flattened N*H*W on lanes.
    x2d = jnp.transpose(x, (1, 0, 2, 3)).reshape(Cin, M)
    b2d = jnp.reshape(bias, (Cout, 1)).astype(jnp.float32)

    TM = _pick_m_tile(M)
    grid = (M // TM,)

    out2d = pl.pallas_call(
        _linear_kernel,
        out_shape=jax.ShapeDtypeStruct((Cout, M), x.dtype),
        grid=grid,
        in_specs=[
            pl.BlockSpec((Cin, TM), lambda i: (0, i)),    # activations (tiled on M)
            pl.BlockSpec((Cout, Cin), lambda i: (0, 0)),  # weight, resident in VMEM
            pl.BlockSpec((Cout, 1), lambda i: (0, 0)),    # bias, resident in VMEM
        ],
        out_specs=pl.BlockSpec((Cout, TM), lambda i: (0, i)),
        compiler_params=pltpu.CompilerParams(
            dimension_semantics=("parallel",)),
    )(x2d, weight, b2d)

    # Back to PyTorch's NCHW output layout.
    return out2d.reshape(Cout, N, H, W).transpose(1, 0, 2, 3)


# ---------------- pure-JAX reference for the correctness check --------------
def _ref_forward(x, weight, bias):
    # Mirrors: transpose(1,3) -> nn.Linear (x @ W.T) -> transpose(1,3) -> +bias
    xt = jnp.transpose(x, (0, 3, 2, 1))             # (N, W, H, Cin)
    y = jnp.einsum('nwhc,oc->nwho', xt, weight)     # (N, W, H, Cout)
    y = jnp.transpose(y, (0, 3, 2, 1))              # (N, Cout, H, W)
    return y + jnp.reshape(bias, (1, -1, 1, 1))


if __name__ == "__main__":
    N, Cin, H, W = 2, 4, 16, 16
    Cout = 8
    key = jax.random.PRNGKey(0)
    kx, kw, kb = jax.random.split(key, 3)

    x = jax.random.normal(kx, (N, Cin, H, W), jnp.float32)
    # Module init: weight ~ N(0, 0.05); bias is zero-initialized in the module,
    # but we use a small nonzero bias here so the bias-add path is exercised.
    weight = 0.05 * jax.random.normal(kw, (Cout, Cin), jnp.float32)
    bias = 0.1 * jax.random.normal(kb, (1, Cout, 1, 1), jnp.float32)

    out = linear_forward(x, weight, bias)
    out = jax.block_until_ready(out)

    ref = _ref_forward(x, weight, bias)
    np.testing.assert_allclose(np.asarray(out), np.asarray(ref),
                               atol=2e-3, rtol=1e-2)
    print("KERNEL_OK")
</pallas_src>

<mosaic_0001>
module attributes {stable_mosaic.version = 11 : i64} {
  func.func @_linear_kernel(%arg0: i32, %arg1: memref<4x512xf32, #tpu.memory_space<vmem>>, %arg2: memref<8x4xf32, #tpu.memory_space<vmem>>, %arg3: memref<8x1xf32, #tpu.memory_space<vmem>>, %arg4: memref<8x512xf32, #tpu.memory_space<vmem>>) attributes {dimension_semantics = [#tpu.dimension_semantics<parallel>], iteration_bounds = array<i64: 1>, scalar_prefetch = 0 : i64, scratch_operands = 0 : i64, tpu.core_type = #tpu.core_type<tc>, window_params = [{transform_indices = @transform_0, window_bounds = array<i64: 4, 512>}, {pipeline_mode = #tpu.pipeline_mode<synchronous>, transform_indices = @transform_1, window_bounds = array<i64: 8, 4>}, {pipeline_mode = #tpu.pipeline_mode<synchronous>, transform_indices = @transform_2, window_bounds = array<i64: 8, 1>}, {transform_indices = @transform_3, window_bounds = array<i64: 8, 512>}]} {
    %c0 = arith.constant 0 : index
    %c0_0 = arith.constant 0 : index
    %0 = vector.load %arg2[%c0, %c0_0] : memref<8x4xf32, #tpu.memory_space<vmem>>, vector<8x4xf32>
    %c0_1 = arith.constant 0 : index
    %c0_2 = arith.constant 0 : index
    %1 = vector.load %arg1[%c0_1, %c0_2] : memref<4x512xf32, #tpu.memory_space<vmem>>, vector<4x512xf32>
    %cst = arith.constant dense<0.000000e+00> : vector<8x512xf32>
    %2 = tpu.matmul %0, %1, %cst {dimension_numbers = #tpu.dot_dimension_numbers<[1], [0], [0], [1], [0, 0, 1, 1], [], []>} : vector<8x4xf32>, vector<4x512xf32>, vector<8x512xf32> -> vector<8x512xf32>
    %c0_3 = arith.constant 0 : index
    %c0_4 = arith.constant 0 : index
    %3 = vector.load %arg3[%c0_3, %c0_4] : memref<8x1xf32, #tpu.memory_space<vmem>>, vector<8x1xf32>
    %4 = vector.broadcast %3 : vector<8x1xf32> to vector<8x512xf32>
    %5 = arith.addf %2, %4 : vector<8x512xf32>
    %c0_5 = arith.constant 0 : index
    %c0_6 = arith.constant 0 : index
    %6 = vector.load %arg4[%c0_5, %c0_6] : memref<8x512xf32, #tpu.memory_space<vmem>>, vector<8x512xf32>
    tpu.vector_store %arg4[%c0_5, %c0_6], %5 {strides = array<i32>} : memref<8x512xf32, #tpu.memory_space<vmem>>, vector<8x512xf32>,
    return
  }
  func.func @transform_0(%arg0: i32) -> (i32, i32) {
    %c0_i32 = arith.constant 0 : i32
    %c0_i32_0 = arith.constant 0 : i32
    return %c0_i32, %arg0 : i32, i32
  }
  func.func @transform_1(%arg0: i32) -> (i32, i32) {
    %c0_i32 = arith.constant 0 : i32
    %c0_i32_0 = arith.constant 0 : i32
    %c0_i32_1 = arith.constant 0 : i32
    return %c0_i32, %c0_i32_0 : i32, i32
  }
  func.func @transform_2(%arg0: i32) -> (i32, i32) {
    %c0_i32 = arith.constant 0 : i32
    %c0_i32_0 = arith.constant 0 : i32
    %c0_i32_1 = arith.constant 0 : i32
    return %c0_i32, %c0_i32_0 : i32, i32
  }
  func.func @transform_3(%arg0: i32) -> (i32, i32) {
    %c0_i32 = arith.constant 0 : i32
    %c0_i32_0 = arith.constant 0 : i32
    return %c0_i32, %arg0 : i32, i32
  }
}

</mosaic_0001>

<llo_original>
// kernel: tpu_custom_call.1
$region0: #{tpu_custom_call.1}
  #allocation0 [shape = 'u32[]', space=smem, size = 0x4, offset = 0x4, fixed_abs, tag = 'smem constant byte address 0x4 - core index']
  #allocation1 [shape = 'u32[72,128]{1,0:T(1,128)}', space=vmem, size = 0x9000, scoped, tag = 'internal scratch']
  %s0 = inlined_call_operand.vmem [shape: f32[4,512], index: 0, kind: input, shape index: {}]
  %s1 = inlined_call_operand.vmem [shape: f32[8,4], index: 1, kind: input, shape index: {}]
  %s2 = inlined_call_operand.vmem [shape: f32[8,1], index: 2, kind: input, shape index: {}]
  %s3 = inlined_call_operand.hbm [shape: f32[8,512], index: 3, kind: output, shape index: {}]
  %s4 = sld [smem:[#allocation0]]
  $region22: #{tpu_custom_call.1} parent=0
    _
  %s6 = ssub.s32 1, %s4
  %s7 = scalar_select 0, %s6, %s4
  $region1: #{tpu_custom_call.1} parent=0
    #allocation2 [shape = 'u8[16384]{0}', space=vmem, size = 0x4000, scoped, tag = 'output window, operand 0, single buffered']
    #allocation3 [shape = 's32[1]{0}', space=sflag, size = 0x4, scoped, tag = 'scoped memory for tpu_custom_call.1']
    %8 = vsyncpa [#allocation3], 0
    // Predicated region
    $region2: #{tpu_custom_call.1} parent=1 // pred_check
      _
    $region3: #{tpu_custom_call.1} parent=1 // pred_check_branch
      %10 = sbr.rel (0) target = $region5
    $region4: #{tpu_custom_call.1} parent=1 // pred_region
      _
    $region5: #{tpu_custom_call.1} parent=1 // pred_fallthru
      _
    // Predicated region
    $region6: #{tpu_custom_call.1} parent=1 // pred_check
      _
    $region7: #{tpu_custom_call.1} parent=1 // pred_check_branch
      %12 = sbr.rel (0) target = $region9
    $region8: #{tpu_custom_call.1} parent=1 // pred_region
      _
    $region9: #{tpu_custom_call.1} parent=1 // pred_fallthru
      _
    // Predicated region
    $region10: #{tpu_custom_call.1} parent=1 // pred_check
      _
    $region11: #{tpu_custom_call.1} parent=1 // pred_check_branch
      %14 = sbr.rel (0) target = $region13
    $region12: #{tpu_custom_call.1} parent=1 // pred_region
      _
    $region13: #{tpu_custom_call.1} parent=1 // pred_fallthru
      _
    %v15 = vld [vmem:[%s1] sm:$0xff]
    %v16 = vld [vmem:[%s0] sm:$0xff]
    %v17 = vld [vmem:[%s0 + $0x8] sm:$0xff]
    %v18 = vld [vmem:[%s2] sm:$0xff]
    %20 = vset.pattern.permute.xlu0 0
    %21 = vperm.xlu0 %20, %v18
    %v22 = vpop.permute.xlu0 %21
    %26 = vst [vmem:[#allocation1] ss:$2 sm:$0xff] %v16
    %s27 = scalar_lea.vmem [#allocation1], 16
    %28 = vst [vmem:[%s27] ss:$2 sm:$0xff] %v17
    %v29 = vld.sshfl [vmem:[#allocation1] sm:$0xff pattern:$0x75316420]
    %v30 = vld.sshfl [vmem:[#allocation1 + $0x8] sm:$0xff pattern:$0x75316420]
    %v31 = vld.sshfl [vmem:[#allocation1 + $0x10] sm:$0xff pattern:$0x75316420]
    %v32 = vld.sshfl [vmem:[#allocation1 + $0x18] sm:$0xff pattern:$0x75316420]
    %vm33 = vcmask 31744
    %v35 = vsel %vm33, %v15, 0
    %vm37 = vcmask 1043456
    %v38 = vsel %vm37, %v29, 0
    %v40 = vsel %vm37, %v30, 0
    %v42 = vsel %vm37, %v31, 0
    %v44 = vsel %vm37, %v32, 0
    %46 = vmatpush.msra.mxu0 0.0
    %47 = vmatpush.msra.mxu0 0.0
    %48 = vmatpush.msra.mxu0 0.0
    %49 = vmatpush.msra.mxu0 0.0
    %50 = vmatpush.msra.mxu0 0.0
    %51 = vmatpush.msra.mxu0 0.0
    %52 = vmatpush.msra.mxu0 0.0
    %53 = vmatpush.msra.mxu0 0.0
    %54 = vmatpush.msra.mxu0 0.0
    %55 = vmatpush.msra.mxu0 0.0
    %56 = vmatpush.msra.mxu0 0.0
    %57 = vmatpush.msra.mxu0 0.0
    %58 = vmatpush.msra.mxu0 0.0
    %59 = vmatpush.msra.mxu0 0.0
    %60 = vmatpush.msra.mxu0 0.0
    %61 = vmatpush.msra.mxu0 %v38
    %62 = vmatmul.f32.gmra.mxu0 %v35
    %v63 = vpop.f32.mrf.mxu0
    %v64 = vadd.f32 %v22, %v63
    %65 = vdwg.mxu0
    %66 = vmatpush.msra.mxu0 0.0
    %67 = vmatpush.msra.mxu0 0.0
    %68 = vmatpush.msra.mxu0 0.0
    %69 = vmatpush.msra.mxu0 0.0
    %70 = vmatpush.msra.mxu0 0.0
    %71 = vmatpush.msra.mxu0 0.0
    %72 = vmatpush.msra.mxu0 0.0
    %73 = vmatpush.msra.mxu0 0.0
    %74 = vmatpush.msra.mxu0 0.0
    %75 = vmatpush.msra.mxu0 0.0
    %76 = vmatpush.msra.mxu0 0.0
    %77 = vmatpush.msra.mxu0 0.0
    %78 = vmatpush.msra.mxu0 0.0
    %79 = vmatpush.msra.mxu0 0.0
    %80 = vmatpush.msra.mxu0 0.0
    %81 = vmatpush.msra.mxu0 %v40
    %82 = vmatmul.f32.gmra.mxu0 %v35
    %v83 = vpop.f32.mrf.mxu0
    %v84 = vadd.f32 %v22, %v83
    %85 = vdwg.mxu0
    %86 = vmatpush.msra.mxu0 0.0
    %87 = vmatpush.msra.mxu0 0.0
    %88 = vmatpush.msra.mxu0 0.0
    %89 = vmatpush.msra.mxu0 0.0
    %90 = vmatpush.msra.mxu0 0.0
    %91 = vmatpush.msra.mxu0 0.0
    %92 = vmatpush.msra.mxu0 0.0
    %93 = vmatpush.msra.mxu0 0.0
    %94 = vmatpush.msra.mxu0 0.0
    %95 = vmatpush.msra.mxu0 0.0
    %96 = vmatpush.msra.mxu0 0.0
    %97 = vmatpush.msra.mxu0 0.0
    %98 = vmatpush.msra.mxu0 0.0
    %99 = vmatpush.msra.mxu0 0.0
    %100 = vmatpush.msra.mxu0 0.0
    %101 = vmatpush.msra.mxu0 %v42
    %102 = vmatmul.f32.gmra.mxu0 %v35
    %v103 = vpop.f32.mrf.mxu0
    %v104 = vadd.f32 %v22, %v103
    %105 = vdwg.mxu0
    %106 = vmatpush.msra.mxu0 0.0
    %107 = vmatpush.msra.mxu0 0.0
    %108 = vmatpush.msra.mxu0 0.0
    %109 = vmatpush.msra.mxu0 0.0
    %110 = vmatpush.msra.mxu0 0.0
    %111 = vmatpush.msra.mxu0 0.0
    %112 = vmatpush.msra.mxu0 0.0
    %113 = vmatpush.msra.mxu0 0.0
    %114 = vmatpush.msra.mxu0 0.0
    %115 = vmatpush.msra.mxu0 0.0
    %116 = vmatpush.msra.mxu0 0.0
    %117 = vmatpush.msra.mxu0 0.0
    %118 = vmatpush.msra.mxu0 0.0
    %119 = vmatpush.msra.mxu0 0.0
    %120 = vmatpush.msra.mxu0 0.0
    %121 = vmatpush.msra.mxu0 %v44
    %122 = vmatmul.f32.gmra.mxu0 %v35
    %v123 = vpop.f32.mrf.mxu0
    %v124 = vadd.f32 %v22, %v123
    %125 = vdwg.mxu0
    %126 = vst [vmem:[#allocation2] sm:$0xff] %v64
    %127 = vst [vmem:[#allocation2 + $0x8] sm:$0xff] %v84
    %128 = vst [vmem:[#allocation2 + $0x10] sm:$0xff] %v104
    %129 = vst [vmem:[#allocation2 + $0x18] sm:$0xff] %v124
    // Predicated region
    $region14: #{tpu_custom_call.1} parent=1 // pred_check
      _
    $region15: #{tpu_custom_call.1} parent=1 // pred_check_branch
      %131 = sbr.rel (0) target = $region17
    $region16: #{tpu_custom_call.1} parent=1 // pred_region
      %133 = vsyncadd [#allocation3], 0
      %s135 = sshll.u32 [#allocation2], 4
      %s136 = int_to_ptr.vmem [resolvable:$true] %s135
      %s137 = sshll.u32 %s3, 4
      %s138 = int_to_ptr.hbm [resolvable:$true] %s137
      %140 = dma.vmem_to_hbm [thread:$0]  %s136, 512, %s138, [#allocation3]
    $region17: #{tpu_custom_call.1} parent=1 // pred_fallthru
      _
    // Predicated region
    $region18: #{tpu_custom_call.1} parent=1 // pred_check
      _
    $region19: #{tpu_custom_call.1} parent=1 // pred_check_branch
      %142 = sbr.rel (0) target = $region21
    $region20: #{tpu_custom_call.1} parent=1 // pred_region
      %144 = dma.done [#allocation3], 512
    $region21: #{tpu_custom_call.1} parent=1 // pred_fallthru
      _
    %145 = vsyncpa [#allocation3], 1

</llo_original>
